<compile_context>
chip_gen: v6e
topology: v6e:2x2x1
jax: 0.10.0
libtpu: 0.0.40
codegen_flags: <defaults>
</compile_context>

<pallas_src>
import jax
import jax.numpy as jnp
from jax import lax
from jax.experimental import pallas as pl
from jax.experimental.pallas import tpu as pltpu


def _round_up(x, m):
    return (x + m - 1) // m * m


def _vmem_capacity_bytes():
    try:
        info = pltpu.get_tpu_info()
        cap = getattr(info, "vmem_capacity_bytes", None)
        if cap:
            return int(cap)
    except Exception:
        pass
    return 64 * 1024 * 1024  # conservative fallback (v7x per-TensorCore)


def _crf_logz_kernel(maxlen_ref, emit_ref, len_ref, exp_trans_ref, colmax_ref,
                     strans_ref, etrans_ref, out_ref):
    """Per-row log partition function of a linear-chain CRF (prefix mask)."""
    f32 = jnp.float32

    exp_trans = exp_trans_ref[...]        # (N, N) = exp(trans - colmax), hoisted
    colmax = colmax_ref[...]              # (1, N)
    strans = strans_ref[...]              # (1, N)
    etrans = etrans_ref[...]              # (1, N)
    lens = len_ref[...]                   # (TB, 1) int32 sequence lengths

    alpha0 = strans + emit_ref[0]         # (TB, N)

    # Longest sequence in this batch tile (scalar-prefetched, SMEM): every step
    # past it is dead work for the whole tile, so bound the serial loop by it.
    tmax = maxlen_ref[pl.program_id(0)]

    def body(i, alpha):
        e_i = emit_ref[i]                                              # (TB, N)
        # logsumexp_p(alpha[b,p] + trans[p,c]) as an MXU matmul:
        #   log( exp(alpha - mx) @ exp(trans - colmax) ) + mx + colmax
        mx = jnp.max(alpha, axis=1, keepdims=True)                     # (TB, 1)
        ea = jnp.exp(alpha - mx)                                       # (TB, N)
        dotted = jnp.dot(ea, exp_trans, preferred_element_type=f32)    # (TB, N)
        dotted = jnp.maximum(dotted, 1e-37)                            # guard log(0)
        lse = jnp.log(dotted) + mx + colmax + e_i                      # (TB, N)
        return jnp.where(i < lens, lse, alpha)                         # step mask

    alpha = lax.fori_loop(1, tmax, body, alpha0)

    # finalize: logsumexp(alpha + etrans) per row, single reduction pass
    final = alpha + etrans
    mxf = jnp.max(final, axis=1, keepdims=True)
    logz = mxf + jnp.log(jnp.sum(jnp.exp(final - mxf), axis=1, keepdims=True))

    # lane-dense output block; wrapper reads column 0
    out_ref[...] = jnp.broadcast_to(logz, out_ref.shape)


def crf_loss(emit, target, mask, trans, strans, etrans, *, batch_tile=None):
    """Equivalent of CRF.forward(emit, target, mask) (returns a scalar)."""
    T, B, N = emit.shape
    f32 = jnp.float32

    emit = emit.astype(f32)
    target = target.astype(jnp.int32)
    mask_b = mask.astype(bool)
    trans = trans.astype(f32)
    strans = strans.astype(f32)
    etrans = etrans.astype(f32)

    lengths = jnp.sum(mask_b.astype(jnp.int32), axis=0)                  # (B,)

    # ---- gold-path score: O(T*B) gathers, exact f32, plain XLA --------------
    emit_g = jnp.take_along_axis(emit, target[:, :, None], axis=2)[:, :, 0]
    scores = emit_g.at[1:].add(trans[target[:-1], target[1:]])
    gold = jnp.sum(jnp.where(mask_b, scores, 0.0))
    gold = gold + jnp.sum(strans[target[0]])
    end_tags = target[lengths - 1, jnp.arange(B)]
    gold = gold + jnp.sum(etrans[end_tags])

    # ---- tiling / VMEM sizing (generation-aware) -----------------------------
    Nl = _round_up(N, 128)                    # lane-padded width of a VMEM row
    vmem_cap = _vmem_capacity_bytes()
    vmem_limit = max(32 * 1024 * 1024,
                     min(int(0.45 * vmem_cap), 100 * 1024 * 1024))

    # Budget accounts for double-buffered blocks, grid-invariant constants and
    # per-iteration temporaries (all lane-padded in VMEM).
    const_bytes = 2 * (_round_up(N, 8) * Nl + 3 * 8 * Nl) * 4
    per_row = (2 * T * Nl          # emit block, double-buffered
               + 2 * 128           # lengths block (lane-padded)
               + 2 * 128           # output block
               + 8 * Nl) * 4       # alpha carry + matmul/exp/log temporaries
    budget = int(0.8 * vmem_limit) - const_bytes

    if batch_tile is not None:
        TB = max(8, _round_up(batch_tile, 8))
    else:
        TB = max(8, (budget // per_row) // 8 * 8)
        if B >= 16:
            # Keep >= 2 batch tiles so the "parallel" grid axis can shard
            # across both TensorCores on v7x; ~neutral on single-TC chips.
            TB = min(TB, _round_up((B + 1) // 2, 8))
    TB = min(TB, _round_up(B, 8))
    Bp = _round_up(B, TB)
    nb = Bp // TB

    # ---- kernel operands (no tag-axis padding in HBM) ------------------------
    if Bp == B:
        emit_p = emit
        len_p = lengths.reshape(B, 1)
    else:
        emit_p = jnp.zeros((T, Bp, N), f32).at[:, :B, :].set(emit)
        len_p = jnp.zeros((Bp, 1), jnp.int32).at[:B, 0].set(lengths)
    tile_maxlen = jnp.max(len_p.reshape(nb, TB), axis=1).astype(jnp.int32)  # (nb,)

    colmax = jnp.max(trans, axis=0, keepdims=True)           # (1, N)
    exp_trans = jnp.exp(trans - colmax)                      # hoisted out of kernel
    strans_r = strans.reshape(1, N)
    etrans_r = etrans.reshape(1, N)

    cost = pl.CostEstimate(
        flops=int(2 * T * Bp * N * N),
        transcendentals=int(2 * T * Bp * N + 2 * Bp * N),
        bytes_accessed=int(4 * (T * Bp * N + Bp + N * N + 3 * N + Bp * 128)),
    )

    logz_rows = pl.pallas_call(
        _crf_logz_kernel,
        out_shape=jax.ShapeDtypeStruct((Bp, 128), f32),
        grid_spec=pltpu.PrefetchScalarGridSpec(
            num_scalar_prefetch=1,            # per-tile max sequence length
            grid=(nb,),
            in_specs=[
                pl.BlockSpec((T, TB, N), lambda b, ml: (0, b, 0)),   # emit
                pl.BlockSpec((TB, 1), lambda b, ml: (b, 0)),         # lengths
                pl.BlockSpec((N, N), lambda b, ml: (0, 0)),          # exp(trans-colmax)
                pl.BlockSpec((1, N), lambda b, ml: (0, 0)),          # colmax
                pl.BlockSpec((1, N), lambda b, ml: (0, 0)),          # strans
                pl.BlockSpec((1, N), lambda b, ml: (0, 0)),          # etrans
            ],
            out_specs=pl.BlockSpec((TB, 128), lambda b, ml: (b, 0)),
        ),
        compiler_params=pltpu.CompilerParams(
            dimension_semantics=("parallel",),
            vmem_limit_bytes=vmem_limit,
        ),
        cost_estimate=cost,
    )(tile_maxlen, emit_p, len_p, exp_trans, colmax, strans_r, etrans_r)

    logz_sum = jnp.sum(logz_rows[:B, 0])     # padded rows sliced away
    return (logz_sum - gold) / B


def crf_loss_ref(emit, target, mask, trans, strans, etrans):
    """Pure-JAX replica of the PyTorch forward (for verification)."""
    T, B, N = emit.shape
    alpha = strans + emit[0]
    for i in range(1, T):
        s = trans[None, :, :] + emit[i][:, None, :] + alpha[:, :, None]
        new = jax.scipy.special.logsumexp(s, axis=1)
        alpha = jnp.where(mask[i][:, None], new, alpha)
    logZ = jnp.sum(jax.scipy.special.logsumexp(alpha + etrans, axis=1)) / B
    scores = jnp.take_along_axis(emit, target[:, :, None], axis=2)[:, :, 0]
    scores = scores.at[1:].add(trans[target[:-1], target[1:]])
    sc = jnp.sum(jnp.where(mask, scores, 0.0))
    sc = sc + jnp.sum(strans[target[0]])
    ends = jnp.sum(mask.astype(jnp.int32), axis=0) - 1
    end_tags = target[ends, jnp.arange(B)]
    sc = sc + jnp.sum(etrans[end_tags])
    return logZ - sc / B


if __name__ == "__main__":
    T, B, N = 8, 4, 5
    key = jax.random.PRNGKey(0)
    k1, k2, k3, k4, k5 = jax.random.split(key, 5)

    emit = jax.random.normal(k1, (T, B, N), jnp.float32)
    target = jax.random.randint(k2, (T, B), 0, N, jnp.int32)
    lengths = jnp.array([8, 6, 5, 3], jnp.int32)
    mask = jnp.arange(T)[:, None] < lengths[None, :]          # (T, B) prefix mask

    # NOTE: the PyTorch module zero-inits trans/strans/etrans; use small random
    # values so every term of the loss is exercised.
    trans = 0.1 * jax.random.normal(k3, (N, N), jnp.float32)
    strans = 0.1 * jax.random.normal(k4, (N,), jnp.float32)
    etrans = 0.1 * jax.random.normal(k5, (N,), jnp.float32)

    loss = crf_loss(emit, target, mask, trans, strans, etrans)
    jax.block_until_ready(loss)

    ref = crf_loss_ref(emit, target, mask, trans, strans, etrans)
    # default MXU precision (bf16 inputs, f32 accumulate) -> ~1e-3 rel error
    assert jnp.allclose(loss, ref, atol=5e-3, rtol=5e-3), (float(loss), float(ref))

    print("KERNEL_OK")
</pallas_src>

<mosaic_0001>
module attributes {stable_mosaic.version = 11 : i64} {
  func.func @_crf_logz_kernel(%arg0: i32, %arg1: memref<1xi32, #tpu.memory_space<smem>>, %arg2: memref<8x8x5xf32, #tpu.memory_space<vmem>>, %arg3: memref<8x1xi32, #tpu.memory_space<vmem>>, %arg4: memref<5x5xf32, #tpu.memory_space<vmem>>, %arg5: memref<1x5xf32, #tpu.memory_space<vmem>>, %arg6: memref<1x5xf32, #tpu.memory_space<vmem>>, %arg7: memref<1x5xf32, #tpu.memory_space<vmem>>, %arg8: memref<8x128xf32, #tpu.memory_space<vmem>>) attributes {dimension_semantics = [#tpu.dimension_semantics<parallel>], iteration_bounds = array<i64: 1>, scalar_prefetch = 1 : i64, scratch_operands = 0 : i64, tpu.core_type = #tpu.core_type<tc>, window_params = [{transform_indices = @transform_0, window_bounds = array<i64: 8, 8, 5>}, {transform_indices = @transform_1, window_bounds = array<i64: 8, 1>}, {pipeline_mode = #tpu.pipeline_mode<synchronous>, transform_indices = @transform_2, window_bounds = array<i64: 5, 5>}, {pipeline_mode = #tpu.pipeline_mode<synchronous>, transform_indices = @transform_3, window_bounds = array<i64: 1, 5>}, {pipeline_mode = #tpu.pipeline_mode<synchronous>, transform_indices = @transform_4, window_bounds = array<i64: 1, 5>}, {pipeline_mode = #tpu.pipeline_mode<synchronous>, transform_indices = @transform_5, window_bounds = array<i64: 1, 5>}, {transform_indices = @transform_6, window_bounds = array<i64: 8, 128>}]} {
    %c0 = arith.constant 0 : index
    %c0_0 = arith.constant 0 : index
    %0 = vector.load %arg4[%c0, %c0_0] : memref<5x5xf32, #tpu.memory_space<vmem>>, vector<5x5xf32>
    %c0_1 = arith.constant 0 : index
    %c0_2 = arith.constant 0 : index
    %1 = vector.load %arg5[%c0_1, %c0_2] : memref<1x5xf32, #tpu.memory_space<vmem>>, vector<1x5xf32>
    %c0_3 = arith.constant 0 : index
    %c0_4 = arith.constant 0 : index
    %2 = vector.load %arg6[%c0_3, %c0_4] : memref<1x5xf32, #tpu.memory_space<vmem>>, vector<1x5xf32>
    %c0_5 = arith.constant 0 : index
    %c0_6 = arith.constant 0 : index
    %3 = vector.load %arg7[%c0_5, %c0_6] : memref<1x5xf32, #tpu.memory_space<vmem>>, vector<1x5xf32>
    %c0_7 = arith.constant 0 : index
    %c0_8 = arith.constant 0 : index
    %4 = vector.load %arg3[%c0_7, %c0_8] : memref<8x1xi32, #tpu.memory_space<vmem>>, vector<8x1xi32>
    %c0_9 = arith.constant 0 : index
    %c0_10 = arith.constant 0 : index
    %c0_11 = arith.constant 0 : index
    %5 = vector.load %arg2[%c0_9, %c0_10, %c0_11] : memref<8x8x5xf32, #tpu.memory_space<vmem>>, vector<1x8x5xf32>
    %6 = vector.shape_cast %5 : vector<1x8x5xf32> to vector<8x5xf32>
    %7 = vector.broadcast %2 : vector<1x5xf32> to vector<8x5xf32>
    %8 = arith.addf %7, %6 : vector<8x5xf32>
    %9 = arith.index_cast %arg0 : i32 to index
    %10 = memref.load %arg1[%9] : memref<1xi32, #tpu.memory_space<smem>>
    %c1_i32 = arith.constant 1 : i32
    %11 = arith.subi %10, %c1_i32 : i32
    %12 = arith.addi %c1_i32, %11 : i32
    %c1_i32_12 = arith.constant 1 : i32
    %13 = scf.for %arg9 = %c1_i32 to %12 step %c1_i32_12 iter_args(%arg10 = %8) -> (vector<8x5xf32>)  : i32 {
      %28 = arith.index_cast %arg9 : i32 to index
      %c0_16 = arith.constant 0 : index
      %c0_17 = arith.constant 0 : index
      %29 = vector.load %arg2[%28, %c0_16, %c0_17] : memref<8x8x5xf32, #tpu.memory_space<vmem>>, vector<1x8x5xf32>
      %30 = vector.shape_cast %29 : vector<1x8x5xf32> to vector<8x5xf32>
      %cst_18 = arith.constant dense<0xFF800000> : vector<8xf32>
      %31 = vector.multi_reduction <maximumf>, %arg10, %cst_18 [1] : vector<8x5xf32> to vector<8xf32>
      %32 = vector.shape_cast %31 : vector<8xf32> to vector<8x1xf32>
      %33 = vector.broadcast %32 : vector<8x1xf32> to vector<8x5xf32>
      %34 = arith.subf %arg10, %33 : vector<8x5xf32>
      %35 = math.exp %34 : vector<8x5xf32>
      %cst_19 = arith.constant dense<0.000000e+00> : vector<8x5xf32>
      %36 = tpu.matmul %35, %0, %cst_19 {dimension_numbers = #tpu.dot_dimension_numbers<[1], [0], [0], [1], [0, 0, 1, 1], [], []>} : vector<8x5xf32>, vector<5x5xf32>, vector<8x5xf32> -> vector<8x5xf32>
      %cst_20 = arith.constant 9.99999991E-38 : f32
      %37 = vector.broadcast %cst_20 : f32 to vector<8x5xf32>
      %38 = arith.maximumf %36, %37 : vector<8x5xf32>
      %39 = math.log %38 : vector<8x5xf32>
      %40 = vector.broadcast %32 : vector<8x1xf32> to vector<8x5xf32>
      %41 = arith.addf %39, %40 : vector<8x5xf32>
      %42 = vector.broadcast %1 : vector<1x5xf32> to vector<8x5xf32>
      %43 = arith.addf %41, %42 : vector<8x5xf32>
      %44 = arith.addf %43, %30 : vector<8x5xf32>
      %45 = vector.broadcast %arg9 : i32 to vector<8x1xi32>
      %46 = arith.cmpi slt, %45, %4 : vector<8x1xi32>
      %47 = vector.shape_cast %46 : vector<8x1xi1> to vector<8x1xi1>
      %48 = vector.broadcast %47 : vector<8x1xi1> to vector<8x5xi1>
      %49 = arith.select %48, %44, %arg10 : vector<8x5xi1>, vector<8x5xf32>
      scf.yield %49 : vector<8x5xf32>
    }
    %14 = vector.broadcast %3 : vector<1x5xf32> to vector<8x5xf32>
    %15 = arith.addf %13, %14 : vector<8x5xf32>
    %cst = arith.constant dense<0xFF800000> : vector<8xf32>
    %16 = vector.multi_reduction <maximumf>, %15, %cst [1] : vector<8x5xf32> to vector<8xf32>
    %17 = vector.shape_cast %16 : vector<8xf32> to vector<8x1xf32>
    %18 = vector.broadcast %17 : vector<8x1xf32> to vector<8x5xf32>
    %19 = arith.subf %15, %18 : vector<8x5xf32>
    %20 = math.exp %19 : vector<8x5xf32>
    %cst_13 = arith.constant dense<0.000000e+00> : vector<8xf32>
    %21 = vector.multi_reduction <add>, %20, %cst_13 [1] : vector<8x5xf32> to vector<8xf32>
    %22 = vector.shape_cast %21 : vector<8xf32> to vector<8x1xf32>
    %23 = math.log %22 : vector<8x1xf32>
    %24 = arith.addf %17, %23 : vector<8x1xf32>
    %25 = vector.shape_cast %24 : vector<8x1xf32> to vector<8x1xf32>
    %26 = vector.broadcast %25 : vector<8x1xf32> to vector<8x128xf32>
    %c0_14 = arith.constant 0 : index
    %c0_15 = arith.constant 0 : index
    %27 = vector.load %arg8[%c0_14, %c0_15] : memref<8x128xf32, #tpu.memory_space<vmem>>, vector<8x128xf32>
    tpu.vector_store %arg8[%c0_14, %c0_15], %26 {strides = array<i32>} : memref<8x128xf32, #tpu.memory_space<vmem>>, vector<8x128xf32>,
    return
  }
  func.func @transform_0(%arg0: i32, %arg1: memref<1xi32, #tpu.memory_space<smem>>) -> (i32, i32, i32) {
    %c0_i32 = arith.constant 0 : i32
    %c0_i32_0 = arith.constant 0 : i32
    %c0_i32_1 = arith.constant 0 : i32
    return %c0_i32, %arg0, %c0_i32_0 : i32, i32, i32
  }
  func.func @transform_1(%arg0: i32, %arg1: memref<1xi32, #tpu.memory_space<smem>>) -> (i32, i32) {
    %c0_i32 = arith.constant 0 : i32
    %c0_i32_0 = arith.constant 0 : i32
    return %arg0, %c0_i32 : i32, i32
  }
  func.func @transform_2(%arg0: i32, %arg1: memref<1xi32, #tpu.memory_space<smem>>) -> (i32, i32) {
    %c0_i32 = arith.constant 0 : i32
    %c0_i32_0 = arith.constant 0 : i32
    %c0_i32_1 = arith.constant 0 : i32
    return %c0_i32, %c0_i32_0 : i32, i32
  }
  func.func @transform_3(%arg0: i32, %arg1: memref<1xi32, #tpu.memory_space<smem>>) -> (i32, i32) {
    %c0_i32 = arith.constant 0 : i32
    %c0_i32_0 = arith.constant 0 : i32
    %c0_i32_1 = arith.constant 0 : i32
    return %c0_i32, %c0_i32_0 : i32, i32
  }
  func.func @transform_4(%arg0: i32, %arg1: memref<1xi32, #tpu.memory_space<smem>>) -> (i32, i32) {
    %c0_i32 = arith.constant 0 : i32
    %c0_i32_0 = arith.constant 0 : i32
    %c0_i32_1 = arith.constant 0 : i32
    return %c0_i32, %c0_i32_0 : i32, i32
  }
  func.func @transform_5(%arg0: i32, %arg1: memref<1xi32, #tpu.memory_space<smem>>) -> (i32, i32) {
    %c0_i32 = arith.constant 0 : i32
    %c0_i32_0 = arith.constant 0 : i32
    %c0_i32_1 = arith.constant 0 : i32
    return %c0_i32, %c0_i32_0 : i32, i32
  }
  func.func @transform_6(%arg0: i32, %arg1: memref<1xi32, #tpu.memory_space<smem>>) -> (i32, i32) {
    %c0_i32 = arith.constant 0 : i32
    %c0_i32_0 = arith.constant 0 : i32
    return %arg0, %c0_i32 : i32, i32
  }
}

</mosaic_0001>

<llo_original>
// kernel: tpu_custom_call.1
$region0: #{tpu_custom_call.1}
  #allocation0 [shape = 'u32[]', space=smem, size = 0x4, offset = 0x4, fixed_abs, tag = 'smem constant byte address 0x4 - core index']
  #allocation1 [shape = 'u32[144,128]{1,0:T(1,128)}', space=vmem, size = 0x12000, scoped, tag = 'internal scratch']
  #allocation2 [shape = 's32[1]{0}', space=sflag, size = 0x4, scoped, tag = 'scoped memory for tpu_custom_call.1']
  #allocation3 [shape = 's32[1]{0:T(128)S(6)}', space=smem, size = 0x200, scoped, tag = 'prefetched SMEM operand 0']
  %s0 = inlined_call_operand.<no memory space> [shape: s32[1], index: 0, kind: input, shape index: {}]
  %s1 = inlined_call_operand.vmem [shape: f32[8,8,5], index: 1, kind: input, shape index: {}]
  %s2 = inlined_call_operand.vmem [shape: s32[8,1], index: 2, kind: input, shape index: {}]
  %s3 = inlined_call_operand.vmem [shape: f32[5,5], index: 3, kind: input, shape index: {}]
  %s4 = inlined_call_operand.vmem [shape: f32[1,5], index: 4, kind: input, shape index: {}]
  %s5 = inlined_call_operand.vmem [shape: f32[1,5], index: 5, kind: input, shape index: {}]
  %s6 = inlined_call_operand.vmem [shape: f32[1,5], index: 6, kind: input, shape index: {}]
  %s7 = inlined_call_operand.hbm [shape: f32[8,128], index: 7, kind: output, shape index: {}]
  %s8 = sld [smem:[#allocation0]]
  $region41: #{tpu_custom_call.1} parent=0
    _
  %s10 = ssub.s32 1, %s8
  %s11 = scalar_select 0, %s10, %s8
  %12 = sst [smem:[#allocation3]] %s0
  $region1: #{tpu_custom_call.1} parent=0
    #allocation4 [shape = 'u8[4096]{0}', space=vmem, size = 0x1000, scoped, tag = 'output window, operand 0, single buffered']
    #allocation5 [shape = 's32[1]{0}', space=sflag, size = 0x4, scoped, tag = 'scoped memory for tpu_custom_call.1']
    %13 = vsyncpa [#allocation5], 0
    // Predicated region
    $region2: #{tpu_custom_call.1} parent=1 // pred_check
      _
    $region3: #{tpu_custom_call.1} parent=1 // pred_check_branch
      %15 = sbr.rel (0) target = $region5
    $region4: #{tpu_custom_call.1} parent=1 // pred_region
      _
    $region5: #{tpu_custom_call.1} parent=1 // pred_fallthru
      _
    // Predicated region
    $region6: #{tpu_custom_call.1} parent=1 // pred_check
      _
    $region7: #{tpu_custom_call.1} parent=1 // pred_check_branch
      %17 = sbr.rel (0) target = $region9
    $region8: #{tpu_custom_call.1} parent=1 // pred_region
      _
    $region9: #{tpu_custom_call.1} parent=1 // pred_fallthru
      _
    // Predicated region
    $region10: #{tpu_custom_call.1} parent=1 // pred_check
      _
    $region11: #{tpu_custom_call.1} parent=1 // pred_check_branch
      %19 = sbr.rel (0) target = $region13
    $region12: #{tpu_custom_call.1} parent=1 // pred_region
      _
    $region13: #{tpu_custom_call.1} parent=1 // pred_fallthru
      _
    // Predicated region
    $region14: #{tpu_custom_call.1} parent=1 // pred_check
      _
    $region15: #{tpu_custom_call.1} parent=1 // pred_check_branch
      %21 = sbr.rel (0) target = $region17
    $region16: #{tpu_custom_call.1} parent=1 // pred_region
      _
    $region17: #{tpu_custom_call.1} parent=1 // pred_fallthru
      _
    // Predicated region
    $region18: #{tpu_custom_call.1} parent=1 // pred_check
      _
    $region19: #{tpu_custom_call.1} parent=1 // pred_check_branch
      %23 = sbr.rel (0) target = $region21
    $region20: #{tpu_custom_call.1} parent=1 // pred_region
      _
    $region21: #{tpu_custom_call.1} parent=1 // pred_fallthru
      _
    // Predicated region
    $region22: #{tpu_custom_call.1} parent=1 // pred_check
      _
    $region23: #{tpu_custom_call.1} parent=1 // pred_check_branch
      %25 = sbr.rel (0) target = $region25
    $region24: #{tpu_custom_call.1} parent=1 // pred_region
      _
    $region25: #{tpu_custom_call.1} parent=1 // pred_fallthru
      _
    %v26 = vld [vmem:[%s3] sm:$0x1f]
    %v27 = vld [vmem:[%s4] sm:$0x1]
    %v28 = vld [vmem:[%s5] sm:$0x1]
    %v29 = vld [vmem:[%s6] sm:$0x1]
    %v30 = vld [vmem:[%s2] sm:$0xff]
    %v31 = vld [vmem:[%s1] sm:$0xff]
    %v33 = vlaneseq
    %v34 = vshrl.u32 %v33, 7
    %v35 = vsub.s32 0, %v34
    %v36 = vrot.slane %v28, %v35
    %v38 = vadd.f32 %v36, %v31
    %s39 = sld [smem:[#allocation3]]
    // While loop
    $region26: #{tpu_custom_call.1} parent=1 // loop_pre_header
      _
    $region27: #{tpu_custom_call.1} parent=1 // loop_header
      %s41 = sphi 1, %s43
      %p42 = scmp.ge.s32.totalorder %s41, %s39
      %v46 = vphi %v38, %v153
    $region28: #{tpu_custom_call.1} parent=1 // loop_header_branch
      %45 = sbr.rel (%p42) target = $region32
    $region29: #{tpu_custom_call.1} parent=1 // loop_body
      %s47 = smul.u32 %s41, 8
      %s48 = scalar_lea.vmem %s1, %s47
      %v49 = vld [vmem:[%s48] sm:$0xff]
      %vm50 = vcmask 39936
      %v51 = vsel %vm50, %v46, -inf
      %52 = vmax.xlane.f32.xlu0 %v51
      %v53 = vpop.xlane.xlu0 %52
      %v54 = vsub.f32 %v46, %v53
      %v55 = vmul.f32 %v54, 1.442695
      %v56 = vpow.pop %v55
      %v58 = vsel %vm50, %v56, 0
      %vm60 = vcmask 1044480
      %v62 = vsel %vm60, %v26, 0
      %64 = vmatprep.subr.mxu0 0.0
      %65 = vmatpush1.msra.mxu0 0.0
      %66 = vmatprep.subr.mxu0 0.0
      %67 = vmatpush1.msra.mxu0 0.0
      %68 = vmatprep.subr.mxu0 0.0
      %69 = vmatpush1.msra.mxu0 0.0
      %70 = vmatprep.subr.mxu0 0.0
      %71 = vmatpush1.msra.mxu0 0.0
      %72 = vmatprep.subr.mxu0 0.0
      %73 = vmatpush1.msra.mxu0 0.0
      %74 = vmatprep.subr.mxu0 0.0
      %75 = vmatpush1.msra.mxu0 0.0
      %76 = vmatprep.subr.mxu0 0.0
      %77 = vmatpush1.msra.mxu0 0.0
      %78 = vmatprep.subr.mxu0 0.0
      %79 = vmatpush1.msra.mxu0 0.0
      %80 = vmatprep.subr.mxu0 0.0
      %81 = vmatpush1.msra.mxu0 0.0
      %82 = vmatprep.subr.mxu0 0.0
      %83 = vmatpush1.msra.mxu0 0.0
      %84 = vmatprep.subr.mxu0 0.0
      %85 = vmatpush1.msra.mxu0 0.0
      %86 = vmatprep.subr.mxu0 0.0
      %87 = vmatpush1.msra.mxu0 0.0
      %88 = vmatprep.subr.mxu0 0.0
      %89 = vmatpush1.msra.mxu0 0.0
      %90 = vmatprep.subr.mxu0 0.0
      %91 = vmatpush1.msra.mxu0 0.0
      %92 = vmatprep.subr.mxu0 0.0
      %93 = vmatpush1.msra.mxu0 0.0
      %94 = vmatprep.subr.mxu0 0.0
      %95 = vmatpush1.msra.mxu0 %v62
      %96 = vmatprep.subr.mxu0 0.0
      %97 = vmatpush2.msra.mxu0 0.0
      %98 = vmatprep.subr.mxu0 0.0
      %99 = vmatpush2.msra.mxu0 0.0
      %100 = vmatprep.subr.mxu0 0.0
      %101 = vmatpush2.msra.mxu0 0.0
      %102 = vmatprep.subr.mxu0 0.0
      %103 = vmatpush2.msra.mxu0 0.0
      %104 = vmatprep.subr.mxu0 0.0
      %105 = vmatpush2.msra.mxu0 0.0
      %106 = vmatprep.subr.mxu0 0.0
      %107 = vmatpush2.msra.mxu0 0.0
      %108 = vmatprep.subr.mxu0 0.0
      %109 = vmatpush2.msra.mxu0 0.0
      %110 = vmatprep.subr.mxu0 0.0
      %111 = vmatpush2.msra.mxu0 0.0
      %112 = vmatprep.subr.mxu0 0.0
      %113 = vmatpush2.msra.mxu0 0.0
      %114 = vmatprep.subr.mxu0 0.0
      %115 = vmatpush2.msra.mxu0 0.0
      %116 = vmatprep.subr.mxu0 0.0
      %117 = vmatpush2.msra.mxu0 0.0
      %118 = vmatprep.subr.mxu0 0.0
      %119 = vmatpush2.msra.mxu0 0.0
      %120 = vmatprep.subr.mxu0 0.0
      %121 = vmatpush2.msra.mxu0 0.0
      %122 = vmatprep.subr.mxu0 0.0
      %123 = vmatpush2.msra.mxu0 0.0
      %124 = vmatprep.subr.mxu0 0.0
      %125 = vmatpush2.msra.mxu0 0.0
      %126 = vmatprep.subr.mxu0 0.0
      %127 = vmatpush2.msra.mxu0 0.0
      %128 = vmatprep.mubr.f32.mxu0 0.0
      %129 = vmatmul.mubr.f32.gmra.mxu0 %v58
      %v130 = vpop.f32.mrf.mxu0
      %v131 = vadd.f32 0.0, %v130
      %v132 = vpop.f32.mrf.mxu0
      %133 = vdwg.mxu0
      %v134 = vmax.f32 %v131, 1e-37
      %v135 = vlog2.pop %v134
      %v136 = vmul.f32 %v135, 0.6931472
      %v137 = vadd.f32 %v136, %v53
      %v139 = vlaneseq
      %v140 = vshrl.u32 %v139, 7
      %v141 = vsub.s32 0, %v140
      %v142 = vrot.slane %v27, %v141
      %v144 = vadd.f32 %v137, %v142
      %v145 = vadd.f32 %v144, %v49
      %v146 = vstv %s41
      %vm147 = vcmp.lt.s32.totalorder %v146, %v30
      %v148 = vsel %vm147, 1, 0
      %149 = vset.pattern.permute.xlu0 0
      %150 = vperm.xlu0 %149, %v148
      %v151 = vpop.permute.xlu0 %150
      %vm152 = vcmp.eq.s32.totalorder %v151, 1
      %v153 = vsel %vm152, %v145, %v46
    $region30: #{tpu_custom_call.1} parent=1 // loop_footer
      %s43 = sadd.s32 %s41, 1
    $region31: #{tpu_custom_call.1} parent=1 // loop_footer_branch
      %40 = sbr.rel target = $region27
    $region32: #{tpu_custom_call.1} parent=1 // loop_exit
      _
    %v155 = vlaneseq
    %v156 = vshrl.u32 %v155, 7
    %v157 = vsub.s32 0, %v156
    %v158 = vrot.slane %v29, %v157
    %v160 = vadd.f32 %v46, %v158
    %vm161 = vcmask 39936
    %v162 = vsel %vm161, %v160, -inf
    %163 = vmax.xlane.f32.xlu0 %v162
    %v164 = vpop.xlane.xlu0 %163
    %v165 = vsub.f32 %v160, %v164
    %v166 = vmul.f32 %v165, 1.442695
    %v167 = vpow.pop %v166
    %v168 = vsel %vm161, %v167, 0.0
    %169 = vadd.xlane.f32.xlu0 %v168
    %v170 = vpop.xlane.xlu0 %169
    %v171 = vlog2.pop %v170
    %v172 = vmul.f32 %v171, 0.6931472
    %v173 = vadd.f32 %v164, %v172
    %174 = vst [vmem:[#allocation4] sm:$0xff] %v173
    // Predicated region
    $region33: #{tpu_custom_call.1} parent=1 // pred_check
      _
    $region34: #{tpu_custom_call.1} parent=1 // pred_check_branch
      %176 = sbr.rel (0) target = $region36
    $region35: #{tpu_custom_call.1} parent=1 // pred_region
      %s178 = ssub.s32 128, 128
      %179 = vsyncadd [#allocation5], %s178
      %s181 = sshll.u32 [#allocation4], 4
      %s182 = int_to_ptr.vmem [resolvable:$true] %s181
      %184 = dma.vmem_to_hbm [thread:$0]  %s182, 128, %s7, [#allocation5]
    $region36: #{tpu_custom_call.1} parent=1 // pred_fallthru
      _
    // Predicated region
    $region37: #{tpu_custom_call.1} parent=1 // pred_check
      _
    $region38: #{tpu_custom_call.1} parent=1 // pred_check_branch
      %186 = sbr.rel (0) target = $region40
    $region39: #{tpu_custom_call.1} parent=1 // pred_region
      %187 = dma.done [#allocation5], 128
    $region40: #{tpu_custom_call.1} parent=1 // pred_fallthru
      _
    %188 = vsyncpa [#allocation5], 1

</llo_original>
